<compile_context>
chip_gen: v7x
topology: tpu7x:2x2x1
jax: 0.10.0
libtpu: 0.0.40
codegen_flags: <defaults>
</compile_context>

<pallas_src>
import functools

import jax
import jax.numpy as jnp
from jax.experimental import pallas as pl
from jax.experimental.pallas import tpu as pltpu


# ---------------------------------------------------------------------------
# Kernels
# ---------------------------------------------------------------------------
def _bce_loss_block(x_ref, y_ref, w_ref):
    """Numerically-stable weighted BCE-with-logits on one VMEM block (fp32)."""
    x = x_ref[...].astype(jnp.float32)
    y = y_ref[...].astype(jnp.float32)
    w = w_ref[...].astype(jnp.float32)
    # PyTorch's formulation: max(x, 0) - x*y + log1p(exp(-|x|))
    return (jnp.maximum(x, 0.0) - x * y + jnp.log1p(jnp.exp(-jnp.abs(x)))) * w


def _bce_single_kernel(x_ref, y_ref, w_ref, o_ref, *, inv_n):
    """1-D grid: each step sees the full row -> direct write, no scratch."""
    loss = _bce_loss_block(x_ref, y_ref, w_ref)
    o_ref[...] = jnp.sum(loss, axis=-1, keepdims=True) * jnp.float32(inv_n)


def _bce_acc_kernel(x_ref, y_ref, w_ref, o_ref, acc_ref, *, inv_n):
    """2-D grid: accumulate partial row sums across the N (reduction) axis."""
    k = pl.program_id(1)

    @pl.when(k == 0)
    def _():
        acc_ref[...] = jnp.zeros_like(acc_ref)

    loss = _bce_loss_block(x_ref, y_ref, w_ref)
    acc_ref[...] += jnp.sum(loss, axis=-1, keepdims=True)

    @pl.when(k == pl.num_programs(1) - 1)
    def _():
        o_ref[...] = acc_ref[...] * jnp.float32(inv_n)


# ---------------------------------------------------------------------------
# Tile selection
# ---------------------------------------------------------------------------
_VMEM_BLOCK_BUDGET = 12 * 1024 * 1024  # bytes for the double-buffered input blocks


def _divisor_tile(dim, step, cap):
    """Largest multiple of `step` that divides `dim` and is <= cap (or None)."""
    best = None
    d = step
    hi = min(dim, cap)
    while d <= hi:
        if dim % d == 0:
            best = d
        d += step
    return best


def _choose_tiles(B, N, max_itemsize):
    """Pick (TB, TN): biggest blocks that fit the VMEM budget (mem-bound kernel)."""
    bytes_per_elem = 2 * 3 * max_itemsize  # double-buffered, 3 inputs

    tb_min = 8 if B % 8 == 0 else B

    # --- N tile: prefer the whole row (single pass, no accumulator). ---
    if tb_min * N * bytes_per_elem <= _VMEM_BLOCK_BUDGET:
        TN = N
    elif N % 128 == 0:
        cap_n = max(128, _VMEM_BLOCK_BUDGET // (tb_min * bytes_per_elem))
        TN = _divisor_tile(N, 128, cap_n) or 128
    else:
        # Unaligned N can't be split legally (block must divide the dim or be
        # the full dim); take the whole row and rely on the raised VMEM limit.
        TN = N

    # --- Batch tile: grow to fill the remaining budget. ---
    if B % 8 == 0:
        cap_b = max(8, _VMEM_BLOCK_BUDGET // (TN * bytes_per_elem))
        if B >= 16:
            # Keep >= 2 batch steps so the "parallel" axis can feed both
            # TensorCores on v7x and the pipeline overlaps DMA with compute.
            cap_b = min(cap_b, B // 2)
        TB = _divisor_tile(B, 8, cap_b) or 8
    else:
        TB = B
    return TB, TN


# ---------------------------------------------------------------------------
# Public wrapper
# ---------------------------------------------------------------------------
def sigmoid_bce_loss(inputs, targets, mask, *, batch_tile=None, n_tile=None):
    """Per-sample mean weighted BCE-with-logits loss; returns (B,) float32."""
    B, N = inputs.shape
    assert targets.shape == (B, N) and mask.shape == (B, N)

    max_itemsize = max(
        jnp.dtype(a.dtype).itemsize for a in (inputs, targets, mask)
    )
    auto_tb, auto_tn = _choose_tiles(B, N, max_itemsize)
    TB = auto_tb if batch_tile is None else batch_tile
    TN = auto_tn if n_tile is None else n_tile
    assert B % TB == 0, "batch tile must divide batch_size"
    assert N % TN == 0, "N tile must divide num_outputs"

    single_pass = TN == N
    compiler_params = pltpu.CompilerParams(
        dimension_semantics=("parallel",) if single_pass
        else ("parallel", "arbitrary"),
        vmem_limit_bytes=32 * 1024 * 1024,
    )

    if single_pass:
        out = pl.pallas_call(
            functools.partial(_bce_single_kernel, inv_n=1.0 / N),
            out_shape=jax.ShapeDtypeStruct((B, 1), jnp.float32),
            grid_spec=pltpu.PrefetchScalarGridSpec(
                num_scalar_prefetch=0,
                grid=(B // TB,),
                in_specs=[
                    pl.BlockSpec((TB, N), lambda i: (i, 0)),
                    pl.BlockSpec((TB, N), lambda i: (i, 0)),
                    pl.BlockSpec((TB, N), lambda i: (i, 0)),
                ],
                out_specs=pl.BlockSpec((TB, 1), lambda i: (i, 0)),
            ),
            compiler_params=compiler_params,
        )(inputs, targets, mask)
    else:
        out = pl.pallas_call(
            functools.partial(_bce_acc_kernel, inv_n=1.0 / N),
            out_shape=jax.ShapeDtypeStruct((B, 1), jnp.float32),
            grid_spec=pltpu.PrefetchScalarGridSpec(
                num_scalar_prefetch=0,
                grid=(B // TB, N // TN),
                in_specs=[
                    pl.BlockSpec((TB, TN), lambda i, k: (i, k)),
                    pl.BlockSpec((TB, TN), lambda i, k: (i, k)),
                    pl.BlockSpec((TB, TN), lambda i, k: (i, k)),
                ],
                out_specs=pl.BlockSpec((TB, 1), lambda i, k: (i, 0)),
                scratch_shapes=[pltpu.VMEM((TB, 1), jnp.float32)],
            ),
            compiler_params=compiler_params,
        )(inputs, targets, mask)
    return out.reshape(B)


def _reference(inputs, targets, mask):
    x = inputs.astype(jnp.float32)
    y = targets.astype(jnp.float32)
    w = mask.astype(jnp.float32)
    loss = jnp.maximum(x, 0.0) - x * y + jnp.log1p(jnp.exp(-jnp.abs(x)))
    return jnp.mean(loss * w, axis=1)


if __name__ == "__main__":
    key = jax.random.PRNGKey(0)
    k1, k2, k3 = jax.random.split(key, 3)

    B, N = 16, 512  # (batch_size, num_outputs) -- small, module-consistent
    inputs = jax.random.normal(k1, (B, N), dtype=jnp.float32) * 2.0
    targets = (jax.random.uniform(k2, (B, N)) > 0.5).astype(jnp.float32)
    mask = (jax.random.uniform(k3, (B, N)) > 0.25).astype(jnp.float32)

    ref = _reference(inputs, targets, mask)

    # Auto-tiled call (single-pass path at this size).
    out = sigmoid_bce_loss(inputs, targets, mask)
    jax.block_until_ready(out)
    assert out.shape == (B,)
    assert jnp.allclose(out, ref, atol=1e-5, rtol=1e-5)

    # Explicitly tiled call exercising the N-reduction (accumulator) path.
    out_tiled = sigmoid_bce_loss(inputs, targets, mask, batch_tile=8, n_tile=128)
    jax.block_until_ready(out_tiled)
    assert jnp.allclose(out_tiled, ref, atol=1e-5, rtol=1e-5)

    print("KERNEL_OK")
</pallas_src>

<mosaic_0001>
module attributes {stable_mosaic.version = 11 : i64} {
  func.func @_bce_single_kernel(%arg0: i32, %arg1: memref<8x512xf32, #tpu.memory_space<vmem>>, %arg2: memref<8x512xf32, #tpu.memory_space<vmem>>, %arg3: memref<8x512xf32, #tpu.memory_space<vmem>>, %arg4: memref<8x1xf32, #tpu.memory_space<vmem>>) attributes {dimension_semantics = [#tpu.dimension_semantics<parallel>], iteration_bounds = array<i64: 2>, scalar_prefetch = 0 : i64, scratch_operands = 0 : i64, tpu.core_type = #tpu.core_type<tc>, window_params = [{transform_indices = @transform_0, window_bounds = array<i64: 8, 512>}, {transform_indices = @transform_1, window_bounds = array<i64: 8, 512>}, {transform_indices = @transform_2, window_bounds = array<i64: 8, 512>}, {transform_indices = @transform_3, window_bounds = array<i64: 8, 1>}]} {
    %c0 = arith.constant 0 : index
    %c0_0 = arith.constant 0 : index
    %0 = vector.load %arg1[%c0, %c0_0] : memref<8x512xf32, #tpu.memory_space<vmem>>, vector<8x512xf32>
    %c0_1 = arith.constant 0 : index
    %c0_2 = arith.constant 0 : index
    %1 = vector.load %arg2[%c0_1, %c0_2] : memref<8x512xf32, #tpu.memory_space<vmem>>, vector<8x512xf32>
    %c0_3 = arith.constant 0 : index
    %c0_4 = arith.constant 0 : index
    %2 = vector.load %arg3[%c0_3, %c0_4] : memref<8x512xf32, #tpu.memory_space<vmem>>, vector<8x512xf32>
    %cst = arith.constant 0.000000e+00 : f32
    %3 = vector.broadcast %cst : f32 to vector<8x512xf32>
    %4 = arith.maximumf %0, %3 : vector<8x512xf32>
    %5 = arith.mulf %0, %1 : vector<8x512xf32>
    %6 = arith.subf %4, %5 : vector<8x512xf32>
    %7 = math.absf %0 : vector<8x512xf32>
    %cst_5 = arith.constant 0.000000e+00 : f32
    %8 = vector.broadcast %cst_5 : f32 to vector<8x512xf32>
    %9 = arith.subf %8, %7 : vector<8x512xf32>
    %10 = math.exp %9 : vector<8x512xf32>
    %11 = math.log1p %10 : vector<8x512xf32>
    %12 = arith.addf %6, %11 : vector<8x512xf32>
    %13 = arith.mulf %12, %2 : vector<8x512xf32>
    %cst_6 = arith.constant dense<0.000000e+00> : vector<8xf32>
    %14 = vector.multi_reduction <add>, %13, %cst_6 [1] : vector<8x512xf32> to vector<8xf32>
    %15 = vector.shape_cast %14 : vector<8xf32> to vector<8x1xf32>
    %cst_7 = arith.constant 0.001953125 : f32
    %16 = vector.broadcast %cst_7 : f32 to vector<8x1xf32>
    %17 = arith.mulf %15, %16 : vector<8x1xf32>
    %c0_8 = arith.constant 0 : index
    %c0_9 = arith.constant 0 : index
    %18 = vector.load %arg4[%c0_8, %c0_9] : memref<8x1xf32, #tpu.memory_space<vmem>>, vector<8x1xf32>
    tpu.vector_store %arg4[%c0_8, %c0_9], %17 {strides = array<i32>} : memref<8x1xf32, #tpu.memory_space<vmem>>, vector<8x1xf32>,
    return
  }
  func.func @transform_0(%arg0: i32) -> (i32, i32) {
    %c0_i32 = arith.constant 0 : i32
    %c0_i32_0 = arith.constant 0 : i32
    return %arg0, %c0_i32 : i32, i32
  }
  func.func @transform_1(%arg0: i32) -> (i32, i32) {
    %c0_i32 = arith.constant 0 : i32
    %c0_i32_0 = arith.constant 0 : i32
    return %arg0, %c0_i32 : i32, i32
  }
  func.func @transform_2(%arg0: i32) -> (i32, i32) {
    %c0_i32 = arith.constant 0 : i32
    %c0_i32_0 = arith.constant 0 : i32
    return %arg0, %c0_i32 : i32, i32
  }
  func.func @transform_3(%arg0: i32) -> (i32, i32) {
    %c0_i32 = arith.constant 0 : i32
    %c0_i32_0 = arith.constant 0 : i32
    return %arg0, %c0_i32 : i32, i32
  }
}

</mosaic_0001>

<llo_original>
// kernel: tpu_custom_call.1
$region0: #{tpu_custom_call.1}
  #allocation0 [shape = 'u32[]', space=smem, size = 0x4, offset = 0x4, fixed_abs, tag = 'smem constant byte address 0x4 - core index']
  #allocation1 [shape = 'u32[144,128]{1,0:T(1,128)}', space=vmem, size = 0x12000, scoped, tag = 'internal scratch']
  %s0 = inlined_call_operand.hbm [shape: f32[16,512], index: 0, kind: input, shape index: {}]
  %s1 = inlined_call_operand.hbm [shape: f32[16,512], index: 1, kind: input, shape index: {}]
  %s2 = inlined_call_operand.hbm [shape: f32[16,512], index: 2, kind: input, shape index: {}]
  %s3 = inlined_call_operand.vmem [shape: f32[16,1], index: 3, kind: output, shape index: {}]
  %s4 = sld [smem:[#allocation0]]
  $region57: #{tpu_custom_call.1} parent=0
    _
  %s6 = ssub.s32 1, %s4
  %s7 = scalar_select 0, %s6, %s4
  $region1: #{tpu_custom_call.1} parent=0
    #allocation2 [shape = 'u8[32768]{0}', space=vmem, size = 0x8000, scoped, tag = 'input window, operand 0']
    #allocation3 [shape = 's32[2]{0}', space=sflag, size = 0x8, scoped, tag = 'scoped memory for tpu_custom_call.1']
    #allocation4 [shape = 'u8[32768]{0}', space=vmem, size = 0x8000, scoped, tag = 'input window, operand 1']
    #allocation5 [shape = 's32[2]{0}', space=sflag, size = 0x8, scoped, tag = 'scoped memory for tpu_custom_call.1']
    #allocation6 [shape = 'u8[32768]{0}', space=vmem, size = 0x8000, scoped, tag = 'input window, operand 2']
    %8 = vsyncpa [#allocation3], 0
    %s9 = scalar_lea.sflag [#allocation3], 1
    %10 = vsyncpa %s9, 0
    %11 = vsyncpa [#allocation5], 0
    %s12 = scalar_lea.sflag [#allocation5], 1
    %13 = vsyncpa %s12, 0
    loop: start=0, step=1, limit=4
    $region2: #{tpu_custom_call.1} parent=1 // loop_pre_header
      _
    $region3: #{tpu_custom_call.1} parent=1 // loop_header
      %s15 = sphi 0, %s19
      %p16 = scmp.ge.s32.totalorder %s15, 4
      %s25 = sphi 0, %s27
      %s28 = sphi 0, %s25
      %s29 = sphi 0, %s28
      %s45 = sphi 0, %s29
      %s51 = sphi 0, %s53
      %s54 = sphi 0, %s51
      %s55 = sphi 0, %s54
      %s71 = sphi 0, %s55
      %s77 = sphi 0, %s79
      %s80 = sphi 0, %s77
      %s81 = sphi 0, %s80
      %s97 = sphi 0, %s81
      %s103 = sphi 0, %s105
      %s106 = sphi 0, %s103
      %s107 = sphi 0, %s106
      %s123 = sphi 0, %s107
    $region4: #{tpu_custom_call.1} parent=1 // loop_header_branch
      %18 = sbr.rel (%p16) target = $region8
    $region5: #{tpu_custom_call.1} parent=1 // loop_body
      %s20 = ssub.s32 %s15, 1
      %s21 = ssub.s32 %s15, 2
      %s22 = sadd.s32 %s15, 1
      %s23 = ssub.s32 %s15, %s22
      %p24 = scmp.eq.s32.totalorder %s23, 0
      %s26 = sadd.s32 %s25, 1
      %s27 = scalar_select %p24, %s25, %s26
      %p30 = pneg %p24
      %p31 = scmp.eq.s32.totalorder %s15, 1
      %p32 = por %p30, %p31
      %p33 = scmp.ne.s32.totalorder %s25, %s28
      %p34 = scmp.eq.s32.totalorder %s15, 0
      %p35 = por %p33, %p34
      %p36 = scmp.ne.s32.totalorder %s25, %s28
      %p37 = scmp.eq.s32.totalorder %s20, 1
      %p38 = por %p36, %p37
      %p39 = scmp.ne.s32.totalorder %s28, %s29
      %p40 = scmp.eq.s32.totalorder %s20, 0
      %p41 = por %p39, %p40
      %p42 = scmp.ne.s32.totalorder %s28, %s29
      %p43 = scmp.eq.s32.totalorder %s21, 1
      %p44 = por %p42, %p43
      %p46 = scmp.ne.s32.totalorder %s29, %s45
      %p47 = scmp.eq.s32.totalorder %s21, 0
      %p48 = por %p46, %p47
      %s49 = ssub.s32 %s15, %s22
      %p50 = scmp.eq.s32.totalorder %s49, 0
      %s52 = sadd.s32 %s51, 1
      %s53 = scalar_select %p50, %s51, %s52
      %p56 = pneg %p50
      %p57 = scmp.eq.s32.totalorder %s15, 1
      %p58 = por %p56, %p57
      %p59 = scmp.ne.s32.totalorder %s51, %s54
      %p60 = scmp.eq.s32.totalorder %s15, 0
      %p61 = por %p59, %p60
      %p62 = scmp.ne.s32.totalorder %s51, %s54
      %p63 = scmp.eq.s32.totalorder %s20, 1
      %p64 = por %p62, %p63
      %p65 = scmp.ne.s32.totalorder %s54, %s55
      %p66 = scmp.eq.s32.totalorder %s20, 0
      %p67 = por %p65, %p66
      %p68 = scmp.ne.s32.totalorder %s54, %s55
      %p69 = scmp.eq.s32.totalorder %s21, 1
      %p70 = por %p68, %p69
      %p72 = scmp.ne.s32.totalorder %s55, %s71
      %p73 = scmp.eq.s32.totalorder %s21, 0
      %p74 = por %p72, %p73
      %s75 = ssub.s32 %s15, %s22
      %p76 = scmp.eq.s32.totalorder %s75, 0
      %s78 = sadd.s32 %s77, 1
      %s79 = scalar_select %p76, %s77, %s78
      %p82 = pneg %p76
      %p83 = scmp.eq.s32.totalorder %s15, 1
      %p84 = por %p82, %p83
      %p85 = scmp.ne.s32.totalorder %s77, %s80
      %p86 = scmp.eq.s32.totalorder %s15, 0
      %p87 = por %p85, %p86
      %p88 = scmp.ne.s32.totalorder %s77, %s80
      %p89 = scmp.eq.s32.totalorder %s20, 1
      %p90 = por %p88, %p89
      %p91 = scmp.ne.s32.totalorder %s80, %s81
      %p92 = scmp.eq.s32.totalorder %s20, 0
      %p93 = por %p91, %p92
      %p94 = scmp.ne.s32.totalorder %s80, %s81
      %p95 = scmp.eq.s32.totalorder %s21, 1
      %p96 = por %p94, %p95
      %p98 = scmp.ne.s32.totalorder %s81, %s97
      %p99 = scmp.eq.s32.totalorder %s21, 0
      %p100 = por %p98, %p99
      %s101 = ssub.s32 %s15, %s22
      %p102 = scmp.eq.s32.totalorder %s101, 0
      %s104 = sadd.s32 %s103, 1
      %s105 = scalar_select %p102, %s103, %s104
      %p108 = pneg %p102
      %p109 = scmp.eq.s32.totalorder %s15, 1
      %p110 = por %p108, %p109
      %p111 = scmp.ne.s32.totalorder %s103, %s106
      %p112 = scmp.eq.s32.totalorder %s15, 0
      %p113 = por %p111, %p112
      %p114 = scmp.ne.s32.totalorder %s103, %s106
      %p115 = scmp.eq.s32.totalorder %s20, 1
      %p116 = por %p114, %p115
      %p117 = scmp.ne.s32.totalorder %s106, %s107
      %p118 = scmp.eq.s32.totalorder %s20, 0
      %p119 = por %p117, %p118
      %p120 = scmp.ne.s32.totalorder %s106, %s107
      %p121 = scmp.eq.s32.totalorder %s21, 1
      %p122 = por %p120, %p121
      %p124 = scmp.ne.s32.totalorder %s107, %s123
      %p125 = scmp.eq.s32.totalorder %s21, 0
      %p126 = por %p124, %p125
      %p127 = scmp.le.s32.totalorder 1, %s15
      %p128 = scmp.lt.s32.totalorder %s15, 3
      %p129 = pnand %p127, %p128
      %p130 = pneg %p129
      // Predicated region
      $region9: #{tpu_custom_call.1} parent=5 // pred_check
        _
      $region10: #{tpu_custom_call.1} parent=5 // pred_check_branch
        %132 = sbr.rel (%p129) target = $region12
      $region11: #{tpu_custom_call.1} parent=5 // pred_region
        %s133 = ssub.s32 %s15, 1
      $region12: #{tpu_custom_call.1} parent=5 // pred_fallthru
        _
      %p134 = scmp.lt.s32.totalorder %s15, 2
      // Predicated region
      $region13: #{tpu_custom_call.1} parent=5 // pred_check
        %p135 = pneg %p134
      $region14: #{tpu_custom_call.1} parent=5 // pred_check_branch
        %137 = sbr.rel (%p135) target = $region16
      $region15: #{tpu_custom_call.1} parent=5 // pred_region
        // Predicated region
        $region17: #{tpu_custom_call.1} parent=15 // pred_check
          %p138 = pneg %p35
        $region18: #{tpu_custom_call.1} parent=15 // pred_check_branch
          %140 = sbr.rel (%p138) target = $region20
        $region19: #{tpu_custom_call.1} parent=15 // pred_region
          %s141 = sand.u32 %s25, 1
          %s142 = scalar_lea.sflag [#allocation3], %s141
          %s143 = sand.u32 %s25, 1
          %s144 = smul.addr %s143, 32
          %s145 = scalar_lea.vmem [#allocation2], %s144
          %s147 = ssub.s32 512, 512
          %148 = vsyncadd %s142, %s147
          %s149 = smul.addr %s15, 4
          %s150 = smul.addr %s149, 128
          %s151 = scalar_lea.hbm %s0, %s150
          %s153 = sshll.u32 %s145, 4
          %s154 = int_to_ptr.vmem [resolvable:$true] %s153
          %156 = dma.hbm_to_vmem [thread:$0]  %s151, 512, %s154, %s142
        $region20: #{tpu_custom_call.1} parent=15 // pred_fallthru
          _
        // Predicated region
        $region21: #{tpu_custom_call.1} parent=15 // pred_check
          %p157 = pneg %p61
        $region22: #{tpu_custom_call.1} parent=15 // pred_check_branch
          %159 = sbr.rel (%p157) target = $region24
        $region23: #{tpu_custom_call.1} parent=15 // pred_region
          %s160 = sand.u32 %s15, 1
          %s161 = scalar_lea.sflag [#allocation5], %s160
          %s162 = sand.u32 %s51, 1
          %s163 = smul.addr %s162, 32
          %s164 = scalar_lea.vmem [#allocation4], %s163
          %s166 = ssub.s32 512, 512
          %167 = vsyncadd %s161, %s166
          %s168 = smul.addr %s15, 4
          %s169 = smul.addr %s168, 128
          %s170 = scalar_lea.hbm %s1, %s169
          %s172 = sshll.u32 %s164, 4
          %s173 = int_to_ptr.vmem [resolvable:$true] %s172
          %175 = dma.hbm_to_vmem [thread:$0]  %s170, 512, %s173, %s161
        $region24: #{tpu_custom_call.1} parent=15 // pred_fallthru
          _
        // Predicated region
        $region25: #{tpu_custom_call.1} parent=15 // pred_check
          %p176 = pneg %p87
        $region26: #{tpu_custom_call.1} parent=15 // pred_check_branch
          %178 = sbr.rel (%p176) target = $region28
        $region27: #{tpu_custom_call.1} parent=15 // pred_region
          %s179 = sand.u32 %s15, 1
          %s180 = scalar_lea.sflag [#allocation5], %s179
          %s181 = sand.u32 %s77, 1
          %s182 = smul.addr %s181, 32
          %s183 = scalar_lea.vmem [#allocation6], %s182
          %s185 = ssub.s32 512, 512
          %186 = vsyncadd %s180, %s185
          %s187 = smul.addr %s15, 4
          %s188 = smul.addr %s187, 128
          %s189 = scalar_lea.hbm %s2, %s188
          %s191 = sshll.u32 %s183, 4
          %s192 = int_to_ptr.vmem [resolvable:$true] %s191
          %194 = dma.hbm_to_vmem [thread:$0]  %s189, 512, %s192, %s180
        $region28: #{tpu_custom_call.1} parent=15 // pred_fallthru
          _
      $region16: #{tpu_custom_call.1} parent=5 // pred_fallthru
        _
      %p195 = scmp.le.s32.totalorder 1, %s15
      %p196 = scmp.lt.s32.totalorder %s15, 3
      %p197 = pnand %p195, %p196
      %p198 = pneg %p197
      // Predicated region
      $region29: #{tpu_custom_call.1} parent=5 // pred_check
        _
      $region30: #{tpu_custom_call.1} parent=5 // pred_check_branch
        %200 = sbr.rel (%p197) target = $region32
      $region31: #{tpu_custom_call.1} parent=5 // pred_region
        %s201 = ssub.s32 %s15, 1
        %s202 = sand.u32 %s28, 1
        %s203 = scalar_lea.sflag [#allocation3], %s202
        %s204 = sand.u32 %s28, 1
        %s205 = smul.addr %s204, 32
        %s206 = scalar_lea.vmem [#allocation2], %s205
        // Predicated region
        $region33: #{tpu_custom_call.1} parent=31 // pred_check
          %p207 = pneg %p41
        $region34: #{tpu_custom_call.1} parent=31 // pred_check_branch
          %209 = sbr.rel (%p207) target = $region36
        $region35: #{tpu_custom_call.1} parent=31 // pred_region
          %210 = dma.done %s203, 512
        $region36: #{tpu_custom_call.1} parent=31 // pred_fallthru
          _
        %s211 = sand.u32 %s20, 1
        %s212 = scalar_lea.sflag [#allocation5], %s211
        %s213 = sand.u32 %s54, 1
        %s214 = smul.addr %s213, 32
        %s215 = scalar_lea.vmem [#allocation4], %s214
        // Predicated region
        $region37: #{tpu_custom_call.1} parent=31 // pred_check
          %p216 = pneg %p67
        $region38: #{tpu_custom_call.1} parent=31 // pred_check_branch
          %218 = sbr.rel (%p216) target = $region40
        $region39: #{tpu_custom_call.1} parent=31 // pred_region
          %219 = dma.done %s212, 512
        $region40: #{tpu_custom_call.1} parent=31 // pred_fallthru
          _
        %s220 = sand.u32 %s20, 1
        %s221 = scalar_lea.sflag [#allocation5], %s220
        %s222 = sand.u32 %s80, 1
        %s223 = smul.addr %s222, 32
        %s224 = scalar_lea.vmem [#allocation6], %s223
        // Predicated region
        $region41: #{tpu_custom_call.1} parent=31 // pred_check
          %p225 = pneg %p93
        $region42: #{tpu_custom_call.1} parent=31 // pred_check_branch
          %227 = sbr.rel (%p225) target = $region44
        $region43: #{tpu_custom_call.1} parent=31 // pred_region
          %228 = dma.done %s221, 512
        $region44: #{tpu_custom_call.1} parent=31 // pred_fallthru
          _
        %s229 = sand.u32 %s28, 1
        %s230 = scalar_lea.sflag [#allocation3], %s229
        %s231 = sand.u32 %s28, 1
        %s232 = smul.addr %s231, 32
        %s233 = scalar_lea.vmem [#allocation2], %s232
        %p234 = pneg %p41
        %p235 = pneg %p38
        %s236 = sand.u32 %s20, 1
        %s237 = scalar_lea.sflag [#allocation5], %s236
        %s238 = sand.u32 %s54, 1
        %s239 = smul.addr %s238, 32
        %s240 = scalar_lea.vmem [#allocation4], %s239
        %p241 = pneg %p67
        %p242 = pneg %p64
        %s243 = sand.u32 %s20, 1
        %s244 = scalar_lea.sflag [#allocation5], %s243
        %s245 = sand.u32 %s80, 1
        %s246 = smul.addr %s245, 32
        %s247 = scalar_lea.vmem [#allocation6], %s246
        %p248 = pneg %p93
        %p249 = pneg %p90
        %p250 = pneg %p119
        %p251 = pneg %p116
        %p252 = scmp.lt.s32.totalorder %s20, 1
        %s253 = scalar_select %p252, %s20, 1
        %s254 = smul.addr %s253, 8
        %s255 = scalar_lea.vmem %s3, %s254
        %p256 = scmp.lt.s32.totalorder %s20, 1
        %s257 = scalar_select %p256, %s20, 1
        %s258 = smul.addr %s257, 8
        %s259 = scalar_lea.vmem %s3, %s258
        %v260 = vld [vmem:[%s206] sm:$0xff]
        %v261 = vld [vmem:[%s206 + $0x8] sm:$0xff]
        %v262 = vld [vmem:[%s206 + $0x10] sm:$0xff]
        %v263 = vld [vmem:[%s206 + $0x18] sm:$0xff]
        %v264 = vld [vmem:[%s215] sm:$0xff]
        %v265 = vld [vmem:[%s215 + $0x8] sm:$0xff]
        %v266 = vld [vmem:[%s215 + $0x10] sm:$0xff]
        %v267 = vld [vmem:[%s215 + $0x18] sm:$0xff]
        %v268 = vld [vmem:[%s224] sm:$0xff]
        %v269 = vld [vmem:[%s224 + $0x8] sm:$0xff]
        %v270 = vld [vmem:[%s224 + $0x10] sm:$0xff]
        %v271 = vld [vmem:[%s224 + $0x18] sm:$0xff]
        %v272 = vmax.f32 %v260, 0.0
        %v273 = vmax.f32 %v261, 0.0
        %v274 = vmax.f32 %v262, 0.0
        %v275 = vmax.f32 %v263, 0.0
        %v276 = vmul.f32 %v260, %v264
        %v277 = vmul.f32 %v261, %v265
        %v278 = vmul.f32 %v262, %v266
        %v279 = vmul.f32 %v263, %v267
        %v280 = vsub.f32 %v272, %v276
        %v281 = vsub.f32 %v273, %v277
        %v282 = vsub.f32 %v274, %v278
        %v283 = vsub.f32 %v275, %v279
        %v284 = vand.u32 2147483647, %v260
        %v285 = vand.u32 2147483647, %v261
        %v286 = vand.u32 2147483647, %v262
        %v287 = vand.u32 2147483647, %v263
        %v288 = vsub.f32 0.0, %v284
        %v289 = vsub.f32 0.0, %v285
        %v290 = vsub.f32 0.0, %v286
        %v291 = vsub.f32 0.0, %v287
        %v292 = vmul.f32 %v288, 1.442695
        %v293 = vpow.pop %v292
        %v294 = vmul.f32 %v289, 1.442695
        %v295 = vpow.pop %v294
        %v296 = vmul.f32 %v290, 1.442695
        %v297 = vpow.pop %v296
        %v298 = vmul.f32 %v291, 1.442695
        %v299 = vpow.pop %v298
        %v300 = vadd.f32 %v293, 1.0
        %v301 = vlog2.pop %v300
        %v302 = vmul.f32 %v301, 0.6931472
        %v303 = vmul.f32 -0.5, %v293
        %v304 = vadd.f32 %v303, 1.0
        %v305 = vmul.f32 %v304, %v293
        %v306 = vand.u32 2147483647, %v293
        %vm307 = vcmp.lt.f32.partialorder %v306, 0.0004427343
        %v308 = vsel %vm307, %v305, %v302
        %v309 = vadd.f32 %v295, 1.0
        %v310 = vlog2.pop %v309
        %v311 = vmul.f32 %v310, 0.6931472
        %v312 = vmul.f32 -0.5, %v295
        %v313 = vadd.f32 %v312, 1.0
        %v314 = vmul.f32 %v313, %v295
        %v315 = vand.u32 2147483647, %v295
        %vm316 = vcmp.lt.f32.partialorder %v315, 0.0004427343
        %v317 = vsel %vm316, %v314, %v311
        %v318 = vadd.f32 %v297, 1.0
        %v319 = vlog2.pop %v318
        %v320 = vmul.f32 %v319, 0.6931472
        %v321 = vmul.f32 -0.5, %v297
        %v322 = vadd.f32 %v321, 1.0
        %v323 = vmul.f32 %v322, %v297
        %v324 = vand.u32 2147483647, %v297
        %vm325 = vcmp.lt.f32.partialorder %v324, 0.0004427343
        %v326 = vsel %vm325, %v323, %v320
        %v327 = vadd.f32 %v299, 1.0
        %v328 = vlog2.pop %v327
        %v329 = vmul.f32 %v328, 0.6931472
        %v330 = vmul.f32 -0.5, %v299
        %v331 = vadd.f32 %v330, 1.0
        %v332 = vmul.f32 %v331, %v299
        %v333 = vand.u32 2147483647, %v299
        %vm334 = vcmp.lt.f32.partialorder %v333, 0.0004427343
        %v335 = vsel %vm334, %v332, %v329
        %v336 = vadd.f32 %v280, %v308
        %v337 = vadd.f32 %v281, %v317
        %v338 = vadd.f32 %v282, %v326
        %v339 = vadd.f32 %v283, %v335
        %v340 = vmul.f32 %v336, %v268
        %v341 = vmul.f32 %v337, %v269
        %v342 = vmul.f32 %v338, %v270
        %v343 = vmul.f32 %v339, %v271
        %v344 = vadd.f32 %v340, %v341
        %v345 = vadd.f32 %v344, %v342
        %v346 = vadd.f32 %v345, %v343
        %347 = vadd.xlane.f32.xlu0 %v346
        %v348 = vpop.xlane.xlu0 %347
        %v349 = vmul.f32 %v348, 0.001953125
        %vm350 = vcmask 7168
        %351 = vst.msk [vmem:[%s259] sm:$0xff] %vm350, %v349
        %p352 = scmp.lt.s32.totalorder %s20, 1
        %s353 = scalar_select %p352, %s20, 1
        %s354 = smul.addr %s353, 8
        %s355 = scalar_lea.vmem %s3, %s354
        // Predicated region
        $region45: #{tpu_custom_call.1} parent=31 // pred_check
          %p356 = pneg %p116
        $region46: #{tpu_custom_call.1} parent=31 // pred_check_branch
          %358 = sbr.rel (%p356) target = $region48
        $region47: #{tpu_custom_call.1} parent=31 // pred_region
          _
        $region48: #{tpu_custom_call.1} parent=31 // pred_fallthru
          _
      $region32: #{tpu_custom_call.1} parent=5 // pred_fallthru
        _
      %p359 = scmp.le.s32.totalorder 2, %s15
      // Predicated region
      $region49: #{tpu_custom_call.1} parent=5 // pred_check
        %p360 = pneg %p359
      $region50: #{tpu_custom_call.1} parent=5 // pred_check_branch
        %362 = sbr.rel (%p360) target = $region52
      $region51: #{tpu_custom_call.1} parent=5 // pred_region
        %s363 = ssub.s32 %s15, 2
        // Predicated region
        $region53: #{tpu_custom_call.1} parent=51 // pred_check
          %p364 = pneg %p122
        $region54: #{tpu_custom_call.1} parent=51 // pred_check_branch
          %366 = sbr.rel (%p364) target = $region56
        $region55: #{tpu_custom_call.1} parent=51 // pred_region
          %p367 = scmp.lt.s32.totalorder %s21, 1
          %s368 = scalar_select %p367, %s21, 1
          %s369 = smul.addr %s368, 8
          %s370 = scalar_lea.vmem %s3, %s369
        $region56: #{tpu_custom_call.1} parent=51 // pred_fallthru
          _
      $region52: #{tpu_custom_call.1} parent=5 // pred_fallthru
        _
    $region6: #{tpu_custom_call.1} parent=1 // loop_footer
      %s19 = sadd.s32 1, %s15
    $region7: #{tpu_custom_call.1} parent=1 // loop_footer_branch
      %14 = sbr.rel target = $region3
    $region8: #{tpu_custom_call.1} parent=1 // loop_exit
      _
    %371 = vsyncpa [#allocation3], 1
    %s372 = scalar_lea.sflag [#allocation3], 1
    %373 = vsyncpa %s372, 1
    %374 = vsyncpa [#allocation5], 1
    %s375 = scalar_lea.sflag [#allocation5], 1
    %376 = vsyncpa %s375, 1

</llo_original>
